<compile_context>
chip_gen: v7x
topology: tpu7x:2x2x1
jax: 0.10.0
libtpu: 0.0.40
codegen_flags: <defaults>
</compile_context>

<pallas_src>
import functools

import jax
import jax.numpy as jnp
from jax.experimental import pallas as pl
from jax.experimental.pallas import tpu as pltpu

# MXU input dtype.  bf16 is native on the MXU of every generation (the v5e restriction is
# only on the VPU); accumulation and the epilogue stay f32.
MXU_DTYPE = jnp.bfloat16


# ---------------------------------------------------------------------------
# The single fused whole-network kernel
# ---------------------------------------------------------------------------

def _net_kernel(*refs, stages):
    """Runs every stage of the network on one batch tile.

    refs = (x_ref, w3_0, bias_0, w3_1, bias_1, ..., out_ref, *pool_scratch)

    x_ref:   [BT*H0, W0*C0]          batch tile, lane-dense flattened NHWC (f32)
    w3_s:    [3*Win*Cin, Wout*Cout]  K-stacked banded weights (bf16)
    bias_s:  [1, Wout*Cout]          fused BN (+ shortcut BN) bias, lane-tiled (f32)
    out_ref: [BT*Hf, Wf*Cf]          f32
    pool_scratch: one f32 VMEM buffer per fused max-pool (for strided H reads).
    """
    n_stage = len(stages)
    x_ref = refs[0]
    out_ref = refs[1 + 2 * n_stage]
    scratch = refs[2 + 2 * n_stage:]

    x = x_ref[...]                                  # f32 [rows, wc]
    si = 0
    for s, st in enumerate(stages):
        w_ref = refs[1 + 2 * s]
        b_ref = refs[2 + 2 * s]
        h_img = st['h_in']                          # per-image height at stage input

        # ---- fused 2x2 / stride-2 max pool(s) ---------------------------------
        for p in range(st['n_pool']):
            buf = scratch[si]
            si += 1
            buf[...] = x
            rows = x.shape[0]
            half = rows // 2
            # H direction: strided sublane reads (rows pair up inside each image
            # because every per-image height is even).
            x = jnp.maximum(buf[pl.ds(0, half, stride=2), :],
                            buf[pl.ds(1, half, stride=2), :])
            # W direction: one XLU lane rotation + max.  W stays uncompacted: the
            # banded weights only read column blocks at stride 2**n_pool.
            wcol = x.shape[1]
            blk = st['cin'] * (2 ** p)              # spacing of currently-valid w-blocks
            x = jnp.maximum(x, pltpu.roll(x, wcol - blk, axis=1))
            h_img //= 2

        rows, wcol = x.shape

        # ---- SAME zero padding along H: XLU roll + per-image boundary masks ----
        r = jax.lax.broadcasted_iota(jnp.int32, (rows, 1), 0) % h_img
        x_up = jnp.where(r == 0, 0.0, pltpu.roll(x, 1, axis=0))               # row h-1
        x_dn = jnp.where(r == h_img - 1, 0.0, pltpu.roll(x, rows - 1, axis=0))  # row h+1

        # ---- single K-stacked MXU matmul + f32 epilogue -------------------------
        x3 = jnp.concatenate([x_up, x, x_dn], axis=1).astype(MXU_DTYPE)
        acc = jnp.dot(x3, w_ref[...], preferred_element_type=jnp.float32)
        acc = acc + b_ref[...]
        if st['add_identity']:                      # non-pooled identity residual, in f32
            acc = acc + x
        y = jnp.maximum(acc, 0.0)

        if s == n_stage - 1:
            out_ref[...] = y
        else:
            x = y


# ---------------------------------------------------------------------------
# Wrapper: one pallas_call for the whole network
# ---------------------------------------------------------------------------

def generalized_net_apply(stages, weights, x_nchw, *, batch_tile=None):
    """stages/weights come from build_pallas_stages(); x_nchw is f32 [N, 3, H, W]."""
    n, c0, h0, w0 = x_nchw.shape
    assert c0 == stages[0]['cin'] and h0 == stages[0]['h_in']

    x = jnp.transpose(x_nchw, (0, 2, 3, 1)).astype(jnp.float32)   # NCHW -> NHWC
    x = x.reshape(n * h0, w0 * c0)                                 # lane-dense [N*H, W*C]

    last = stages[-1]
    hf, wcf, cf = last['h_out'], last['wc_out'], last['cout']

    if batch_tile is None:
        batch_tile = 1
        for bt in range(1, n + 1):                  # largest divisor with bt*H0 <= ~256 rows
            ok = (n % bt == 0) and (bt * h0 <= 256)
            if bt != n:
                ok = ok and (bt * h0) % 8 == 0 and (bt * hf) % 8 == 0
            if ok:
                batch_tile = bt
    bt = batch_tile
    grid = (n // bt,)

    in_specs = [pl.BlockSpec((bt * h0, w0 * c0), lambda i: (i, 0))]
    for w3, brow in zip(weights[0::2], weights[1::2]):
        in_specs.append(pl.BlockSpec(w3.shape, lambda i: (0, 0)))
        in_specs.append(pl.BlockSpec(brow.shape, lambda i: (0, 0)))

    scratch_shapes = []
    for st in stages:
        for p in range(st['n_pool']):
            scratch_shapes.append(
                pltpu.VMEM((bt * st['h_in'] // (2 ** p), st['wc_in']), jnp.float32))

    out = pl.pallas_call(
        functools.partial(_net_kernel, stages=tuple(stages)),
        out_shape=jax.ShapeDtypeStruct((n * hf, wcf), jnp.float32),
        grid=grid,
        in_specs=in_specs,
        out_specs=pl.BlockSpec((bt * hf, wcf), lambda i: (i, 0)),
        scratch_shapes=scratch_shapes,
        compiler_params=pltpu.CompilerParams(
            # batch-tile axis is fully independent -> shards across v7x's two TensorCores;
            # no-op (serial loop) on single-TC v5e/v6e.
            dimension_semantics=("parallel",)),
    )(x, *weights)

    out = out.reshape(n, hf, wcf // cf, cf)
    return jnp.transpose(out, (0, 3, 1, 2))                        # NHWC -> NCHW


# ---------------------------------------------------------------------------
# Banded weight construction (host side, folded once per parameter set)
# ---------------------------------------------------------------------------

def _build_stage_weights(w_hwio, bn_scale, bn_bias, w_in, *, n_pool, residual,
                         sc_w=None, sc_scale=None, sc_bias=None):
    """Fold BN scale, kx taps, SAME W-padding, pool stride and the residual path into one
    K-stacked banded matrix [3*Win*Cin, Wout*Cout] (row blocks = ky taps) plus a fused
    bias row [1, Wout*Cout]."""
    cin, cout = int(w_hwio.shape[2]), int(w_hwio.shape[3])
    stride = 2 ** n_pool
    w_out = w_in // stride
    wf = (w_hwio.astype(jnp.float32)
          * bn_scale.astype(jnp.float32)[None, None, None, :])     # fold BN scale

    rows = jnp.arange(w_in)[:, None]
    cols = jnp.arange(w_out)[None, :]

    def band(tap, kx):
        # Output column w reads input w-block stride*(w + kx - 1); out-of-range taps
        # (SAME zero padding along W) simply select nothing.
        sel = (rows == stride * (cols + kx - 1)).astype(jnp.float32)
        return (sel[:, None, :, None] * tap[None, :, None, :]
                ).reshape(w_in * cin, w_out * cout)

    wbs = [band(wf[ky, 0], 0) + band(wf[ky, 1], 1) + band(wf[ky, 2], 2)
           for ky in range(3)]
    bias_total = bn_bias.astype(jnp.float32)

    if residual == 'shortcut':            # DownsampleB: 1x1 conv + BN
        scf = sc_w.astype(jnp.float32) * sc_scale.astype(jnp.float32)[None, :]
        wbs[1] = wbs[1] + band(scf, 1)
        bias_total = bias_total + sc_bias.astype(jnp.float32)
    elif residual == 'identity_fold':     # pooled identity residual, folded into weights
        wbs[1] = wbs[1] + band(jnp.eye(cin, dtype=jnp.float32), 1)
    else:
        assert residual in ('none', 'identity_epilogue')

    w3 = jnp.concatenate(wbs, axis=0).astype(MXU_DTYPE)            # [3*Win*Cin, Wout*Cout]
    bias_row = jnp.tile(bias_total, (w_out,))[None, :]             # [1, Wout*Cout] f32
    return w3, bias_row


def build_pallas_stages(params, h0, w0, c0=3):
    """Precompute (once per parameter set, OUTSIDE jit) the per-stage folded banded
    weights and the static metadata consumed by the fused kernel."""
    stages, weights = [], []

    def add_stage(w_hwio, bn, *, n_pool, residual, cin, h_in, w_in, shortcut=None):
        hh, ww = h_in, w_in
        for _ in range(n_pool):
            assert hh % 2 == 0 and ww % 2 == 0
            hh //= 2
            ww //= 2
        scale, bias = bn
        kw = {}
        if shortcut is not None:
            sc_scale, sc_bias = shortcut['bn']
            kw = dict(sc_w=shortcut['w'], sc_scale=sc_scale, sc_bias=sc_bias)
        w3, brow = _build_stage_weights(w_hwio, scale, bias, w_in,
                                        n_pool=n_pool, residual=residual, **kw)
        cout = int(w_hwio.shape[-1])
        stages.append(dict(n_pool=n_pool, cin=cin, h_in=h_in, wc_in=w_in * cin,
                           h_out=hh, wc_out=ww * cout, cout=cout,
                           add_identity=(residual == 'identity_epilogue')))
        weights.extend([w3, brow])
        return hh, ww, cout

    # first_conv: Conv2d(3, width, 3, s=1, p=1) + BN + ReLU ('cifar' variant)
    cur_h, cur_w, cur_c = add_stage(params['first']['w'], params['first']['bn'],
                                    n_pool=0, residual='none',
                                    cin=c0, h_in=h0, w_in=w0)

    p_code = list(params['pool_code'])
    for i, layer in enumerate(params['layers']):
        n_pool = p_code.count(i)
        if layer['shortcut'] is not None:
            residual = 'shortcut'
        elif n_pool == 0:
            residual = 'identity_epilogue'   # identity added in f32 in the kernel epilogue
        else:
            residual = 'identity_fold'
        cur_h, cur_w, cur_c = add_stage(layer['w'], layer['bn'],
                                        n_pool=n_pool, residual=residual,
                                        cin=cur_c, h_in=cur_h, w_in=cur_w,
                                        shortcut=layer['shortcut'])
    return stages, weights


# ---------------------------------------------------------------------------
# Parameter construction (deterministic, synthetic) + folded BN
# ---------------------------------------------------------------------------

_EPS = 1e-5


def _fold_bn(gamma, beta, mean, var):
    scale = gamma / jnp.sqrt(var + _EPS)
    bias = beta - mean * scale
    return scale, bias


def _rand_bn(key, c):
    k1, k2, k3, k4 = jax.random.split(key, 4)
    gamma = 1.0 + 0.1 * jax.random.normal(k1, (c,), jnp.float32)
    beta = 0.1 * jax.random.normal(k2, (c,), jnp.float32)
    mean = 0.1 * jax.random.normal(k3, (c,), jnp.float32)
    var = 0.5 + jnp.abs(jax.random.normal(k4, (c,), jnp.float32))
    return _fold_bn(gamma, beta, mean, var)


def _rand_conv(key, kh, kw, cin, cout):
    fan_in = kh * kw * cin
    return jax.random.normal(key, (kh, kw, cin, cout), jnp.float32) * (2.0 / fan_in) ** 0.5


def init_generalized_net(key, *, width, pool, double, border, dataset='cifar10'):
    assert 'cifar' in dataset, "only the 'cifar' first_conv variant is implemented"
    params = {'pool_code': list(pool)}
    double_code = list(double)
    keys = jax.random.split(key, 2 + 4 * border)
    ki = 0

    params['first'] = {
        'w': _rand_conv(keys[ki], 3, 3, 3, width),
        'bn': _rand_bn(keys[ki + 1], width),
    }
    ki += 2

    layers = []
    w_cur = width
    for i in range(border):
        last_width = w_cur
        while i in double_code:
            double_code.remove(i)
            w_cur *= 2
        layer = {
            'w': _rand_conv(keys[ki], 3, 3, last_width, w_cur),
            'bn': _rand_bn(keys[ki + 1], w_cur),
            'shortcut': None,
        }
        if last_width != w_cur:  # DownsampleB (stride=1 always in this net)
            layer['shortcut'] = {
                'w': _rand_conv(keys[ki + 2], 1, 1, last_width, w_cur)[0, 0],
                'bn': _rand_bn(keys[ki + 3], w_cur),
            }
        ki += 4
        layers.append(layer)
    params['layers'] = layers
    params['out_dim'] = w_cur
    return params


# ---------------------------------------------------------------------------
# Pure-JAX reference
# ---------------------------------------------------------------------------

def _ref_conv(x, w, padding):
    return jax.lax.conv_general_dilated(
        x, w, window_strides=(1, 1), padding=padding,
        dimension_numbers=('NHWC', 'HWIO', 'NHWC'))


def generalized_net_reference(params, x_nchw):
    x = jnp.transpose(x_nchw, (0, 2, 3, 1)).astype(jnp.float32)
    fs, fb = params['first']['bn']
    h = jnp.maximum(_ref_conv(x, params['first']['w'], 'SAME') * fs + fb, 0.0)
    p_code = list(params['pool_code'])
    for i, layer in enumerate(params['layers']):
        while i in p_code:
            p_code.remove(i)
            h = jax.lax.reduce_window(h, -jnp.inf, jax.lax.max,
                                      (1, 2, 2, 1), (1, 2, 2, 1), 'VALID')
        if layer['shortcut'] is not None:
            sc_s, sc_b = layer['shortcut']['bn']
            res = _ref_conv(h, layer['shortcut']['w'][None, None], 'VALID') * sc_s + sc_b
        else:
            res = h
        s, b = layer['bn']
        h = jnp.maximum(_ref_conv(h, layer['w'], 'SAME') * s + b + res, 0.0)
    return jnp.transpose(h, (0, 3, 1, 2))


# ---------------------------------------------------------------------------
# Main
# ---------------------------------------------------------------------------

if __name__ == "__main__":
    key = jax.random.PRNGKey(0)
    k_param, k_x = jax.random.split(key)

    # GeneralizedNet(depth=?, width=8, pool=[1], double=[1], border=2,
    #                args={'dataset': 'cifar10'})
    params = init_generalized_net(k_param, width=8, pool=[1], double=[1],
                                  border=2, dataset='cifar10')

    # Input: NCHW [2, 3, 16, 16] (CIFAR-like, small)
    x = jax.random.normal(k_x, (2, 3, 16, 16), jnp.float32)

    # Fold BN / residual / padding / pool stride into banded weights once, outside jit.
    stages, weights = build_pallas_stages(params, h0=16, w0=16, c0=3)

    fwd = jax.jit(lambda ws, xin: generalized_net_apply(stages, ws, xin))
    out = jax.block_until_ready(fwd(weights, x))

    ref = generalized_net_reference(params, x)
    assert out.shape == (2, params['out_dim'], 8, 8), out.shape
    max_err = float(jnp.max(jnp.abs(out - ref)))
    # bf16 MXU inputs (f32 accumulation / f32 epilogue) vs the f32 XLA reference.
    assert jnp.allclose(out, ref, rtol=5e-2, atol=5e-2), max_err

    print("KERNEL_OK")
</pallas_src>

<mosaic_0001>
module attributes {stable_mosaic.version = 11 : i64} {
  func.func @_net_kernel(%arg0: i32, %arg1: memref<32x48xf32, #tpu.memory_space<vmem>>, %arg2: memref<144x128xbf16, #tpu.memory_space<vmem>>, %arg3: memref<1x128xf32, #tpu.memory_space<vmem>>, %arg4: memref<384x128xbf16, #tpu.memory_space<vmem>>, %arg5: memref<1x128xf32, #tpu.memory_space<vmem>>, %arg6: memref<384x128xbf16, #tpu.memory_space<vmem>>, %arg7: memref<1x128xf32, #tpu.memory_space<vmem>>, %arg8: memref<16x128xf32, #tpu.memory_space<vmem>>, %arg9: memref<32x128xf32, #tpu.memory_space<vmem>>) attributes {dimension_semantics = [#tpu.dimension_semantics<parallel>], iteration_bounds = array<i64: 1>, scalar_prefetch = 0 : i64, scratch_operands = 1 : i64, tpu.core_type = #tpu.core_type<tc>, window_params = [{transform_indices = @transform_0, window_bounds = array<i64: 32, 48>}, {pipeline_mode = #tpu.pipeline_mode<synchronous>, transform_indices = @transform_1, window_bounds = array<i64: 144, 128>}, {pipeline_mode = #tpu.pipeline_mode<synchronous>, transform_indices = @transform_2, window_bounds = array<i64: 1, 128>}, {pipeline_mode = #tpu.pipeline_mode<synchronous>, transform_indices = @transform_3, window_bounds = array<i64: 384, 128>}, {pipeline_mode = #tpu.pipeline_mode<synchronous>, transform_indices = @transform_4, window_bounds = array<i64: 1, 128>}, {pipeline_mode = #tpu.pipeline_mode<synchronous>, transform_indices = @transform_5, window_bounds = array<i64: 384, 128>}, {pipeline_mode = #tpu.pipeline_mode<synchronous>, transform_indices = @transform_6, window_bounds = array<i64: 1, 128>}, {transform_indices = @transform_7, window_bounds = array<i64: 16, 128>}]} {
    %c0 = arith.constant 0 : index
    %c0_0 = arith.constant 0 : index
    %0 = vector.load %arg1[%c0, %c0_0] : memref<32x48xf32, #tpu.memory_space<vmem>>, vector<32x48xf32>
    %1 = tpu.iota {dimensions = array<i32: 0>} : vector<32x1xi32>
    %c16_i32 = arith.constant 16 : i32
    %c0_i32 = arith.constant 0 : i32
    %2 = arith.cmpi eq, %c16_i32, %c0_i32 : i32
    %c1_i32 = arith.constant 1 : i32
    %3 = arith.select %2, %c1_i32, %c16_i32 : i32
    %4 = vector.broadcast %3 : i32 to vector<32x1xi32>
    %5 = arith.remsi %1, %4 : vector<32x1xi32>
    %c0_i32_1 = arith.constant 0 : i32
    %6 = vector.broadcast %c0_i32_1 : i32 to vector<32x1xi32>
    %7 = arith.cmpi ne, %5, %6 : vector<32x1xi32>
    %c0_i32_2 = arith.constant 0 : i32
    %8 = vector.broadcast %c0_i32_2 : i32 to vector<32x1xi32>
    %9 = arith.cmpi slt, %5, %8 : vector<32x1xi32>
    %c0_i32_3 = arith.constant 0 : i32
    %10 = arith.cmpi slt, %3, %c0_i32_3 : i32
    %11 = vector.broadcast %10 : i1 to vector<32x1xi1>
    %12 = vector.broadcast %11 : vector<32x1xi1> to vector<32x1xi1>
    %13 = arith.xori %9, %12 : vector<32x1xi1>
    %14 = arith.andi %13, %7 : vector<32x1xi1>
    %15 = vector.broadcast %3 : i32 to vector<32x1xi32>
    %16 = arith.addi %5, %15 : vector<32x1xi32>
    %17 = arith.select %14, %16, %5 : vector<32x1xi1>, vector<32x1xi32>
    %c0_i32_4 = arith.constant 0 : i32
    %18 = vector.broadcast %c0_i32_4 : i32 to vector<32x1xi32>
    %19 = arith.cmpi eq, %17, %18 : vector<32x1xi32>
    %c1_i32_5 = arith.constant 1 : i32
    %20 = tpu.dynamic_rotate %0 by %c1_i32_5 dim 0 : vector<32x48xf32>, i32 -> vector<32x48xf32>
    %cst = arith.constant 0.000000e+00 : f32
    %21 = vector.shape_cast %19 : vector<32x1xi1> to vector<32x1xi1>
    %22 = vector.broadcast %21 : vector<32x1xi1> to vector<32x48xi1>
    %23 = vector.broadcast %cst : f32 to vector<32x48xf32>
    %24 = arith.select %22, %23, %20 : vector<32x48xi1>, vector<32x48xf32>
    %c15_i32 = arith.constant 15 : i32
    %25 = vector.broadcast %c15_i32 : i32 to vector<32x1xi32>
    %26 = arith.cmpi eq, %17, %25 : vector<32x1xi32>
    %c31_i32 = arith.constant 31 : i32
    %27 = tpu.dynamic_rotate %0 by %c31_i32 dim 0 : vector<32x48xf32>, i32 -> vector<32x48xf32>
    %cst_6 = arith.constant 0.000000e+00 : f32
    %28 = vector.shape_cast %26 : vector<32x1xi1> to vector<32x1xi1>
    %29 = vector.broadcast %28 : vector<32x1xi1> to vector<32x48xi1>
    %30 = vector.broadcast %cst_6 : f32 to vector<32x48xf32>
    %31 = arith.select %29, %30, %27 : vector<32x48xi1>, vector<32x48xf32>
    %32 = tpu.concatenate %24, %0, %31 in 1 : vector<32x48xf32>, vector<32x48xf32>, vector<32x48xf32> -> vector<32x144xf32>
    %33 = arith.truncf %32 : vector<32x144xf32> to vector<32x144xbf16>
    %c0_7 = arith.constant 0 : index
    %c0_8 = arith.constant 0 : index
    %34 = vector.load %arg2[%c0_7, %c0_8] : memref<144x128xbf16, #tpu.memory_space<vmem>>, vector<144x128xbf16>
    %cst_9 = arith.constant dense<0.000000e+00> : vector<32x128xf32>
    %35 = tpu.matmul %33, %34, %cst_9 {dimension_numbers = #tpu.dot_dimension_numbers<[1], [0], [0], [1], [0, 0, 1, 1], [], []>} : vector<32x144xbf16>, vector<144x128xbf16>, vector<32x128xf32> -> vector<32x128xf32>
    %c0_10 = arith.constant 0 : index
    %c0_11 = arith.constant 0 : index
    %36 = vector.load %arg3[%c0_10, %c0_11] : memref<1x128xf32, #tpu.memory_space<vmem>>, vector<1x128xf32>
    %37 = vector.broadcast %36 : vector<1x128xf32> to vector<32x128xf32>
    %38 = arith.addf %35, %37 : vector<32x128xf32>
    %cst_12 = arith.constant 0.000000e+00 : f32
    %39 = vector.broadcast %cst_12 : f32 to vector<32x128xf32>
    %40 = arith.maximumf %38, %39 : vector<32x128xf32>
    %41 = tpu.iota {dimensions = array<i32: 0>} : vector<32x1xi32>
    %c16_i32_13 = arith.constant 16 : i32
    %c0_i32_14 = arith.constant 0 : i32
    %42 = arith.cmpi eq, %c16_i32_13, %c0_i32_14 : i32
    %c1_i32_15 = arith.constant 1 : i32
    %43 = arith.select %42, %c1_i32_15, %c16_i32_13 : i32
    %44 = vector.broadcast %43 : i32 to vector<32x1xi32>
    %45 = arith.remsi %41, %44 : vector<32x1xi32>
    %c0_i32_16 = arith.constant 0 : i32
    %46 = vector.broadcast %c0_i32_16 : i32 to vector<32x1xi32>
    %47 = arith.cmpi ne, %45, %46 : vector<32x1xi32>
    %c0_i32_17 = arith.constant 0 : i32
    %48 = vector.broadcast %c0_i32_17 : i32 to vector<32x1xi32>
    %49 = arith.cmpi slt, %45, %48 : vector<32x1xi32>
    %c0_i32_18 = arith.constant 0 : i32
    %50 = arith.cmpi slt, %43, %c0_i32_18 : i32
    %51 = vector.broadcast %50 : i1 to vector<32x1xi1>
    %52 = vector.broadcast %51 : vector<32x1xi1> to vector<32x1xi1>
    %53 = arith.xori %49, %52 : vector<32x1xi1>
    %54 = arith.andi %53, %47 : vector<32x1xi1>
    %55 = vector.broadcast %43 : i32 to vector<32x1xi32>
    %56 = arith.addi %45, %55 : vector<32x1xi32>
    %57 = arith.select %54, %56, %45 : vector<32x1xi1>, vector<32x1xi32>
    %c0_i32_19 = arith.constant 0 : i32
    %58 = vector.broadcast %c0_i32_19 : i32 to vector<32x1xi32>
    %59 = arith.cmpi eq, %57, %58 : vector<32x1xi32>
    %c1_i32_20 = arith.constant 1 : i32
    %60 = tpu.dynamic_rotate %40 by %c1_i32_20 dim 0 : vector<32x128xf32>, i32 -> vector<32x128xf32>
    %cst_21 = arith.constant 0.000000e+00 : f32
    %61 = vector.shape_cast %59 : vector<32x1xi1> to vector<32x1xi1>
    %62 = vector.broadcast %61 : vector<32x1xi1> to vector<32x128xi1>
    %63 = vector.broadcast %cst_21 : f32 to vector<32x128xf32>
    %64 = arith.select %62, %63, %60 : vector<32x128xi1>, vector<32x128xf32>
    %c15_i32_22 = arith.constant 15 : i32
    %65 = vector.broadcast %c15_i32_22 : i32 to vector<32x1xi32>
    %66 = arith.cmpi eq, %57, %65 : vector<32x1xi32>
    %c31_i32_23 = arith.constant 31 : i32
    %67 = tpu.dynamic_rotate %40 by %c31_i32_23 dim 0 : vector<32x128xf32>, i32 -> vector<32x128xf32>
    %cst_24 = arith.constant 0.000000e+00 : f32
    %68 = vector.shape_cast %66 : vector<32x1xi1> to vector<32x1xi1>
    %69 = vector.broadcast %68 : vector<32x1xi1> to vector<32x128xi1>
    %70 = vector.broadcast %cst_24 : f32 to vector<32x128xf32>
    %71 = arith.select %69, %70, %67 : vector<32x128xi1>, vector<32x128xf32>
    %72 = tpu.concatenate %64, %40, %71 in 1 : vector<32x128xf32>, vector<32x128xf32>, vector<32x128xf32> -> vector<32x384xf32>
    %73 = arith.truncf %72 : vector<32x384xf32> to vector<32x384xbf16>
    %c0_25 = arith.constant 0 : index
    %c0_26 = arith.constant 0 : index
    %74 = vector.load %arg4[%c0_25, %c0_26] : memref<384x128xbf16, #tpu.memory_space<vmem>>, vector<384x128xbf16>
    %cst_27 = arith.constant dense<0.000000e+00> : vector<32x128xf32>
    %75 = tpu.matmul %73, %74, %cst_27 {dimension_numbers = #tpu.dot_dimension_numbers<[1], [0], [0], [1], [0, 0, 1, 1], [], []>} : vector<32x384xbf16>, vector<384x128xbf16>, vector<32x128xf32> -> vector<32x128xf32>
    %c0_28 = arith.constant 0 : index
    %c0_29 = arith.constant 0 : index
    %76 = vector.load %arg5[%c0_28, %c0_29] : memref<1x128xf32, #tpu.memory_space<vmem>>, vector<1x128xf32>
    %77 = vector.broadcast %76 : vector<1x128xf32> to vector<32x128xf32>
    %78 = arith.addf %75, %77 : vector<32x128xf32>
    %79 = arith.addf %78, %40 : vector<32x128xf32>
    %cst_30 = arith.constant 0.000000e+00 : f32
    %80 = vector.broadcast %cst_30 : f32 to vector<32x128xf32>
    %81 = arith.maximumf %79, %80 : vector<32x128xf32>
    %c0_31 = arith.constant 0 : index
    %c0_32 = arith.constant 0 : index
    %82 = vector.load %arg9[%c0_31, %c0_32] : memref<32x128xf32, #tpu.memory_space<vmem>>, vector<32x128xf32>
    tpu.vector_store %arg9[%c0_31, %c0_32], %81 {strides = array<i32>} : memref<32x128xf32, #tpu.memory_space<vmem>>, vector<32x128xf32>,
    %c0_33 = arith.constant 0 : index
    %c0_34 = arith.constant 0 : index
    %83 = tpu.strided_load %arg9[%c0_33, %c0_34] {strides = array<i32: 2, 1>} : memref<32x128xf32, #tpu.memory_space<vmem>>, vector<16x128xf32>
    %c1 = arith.constant 1 : index
    %c0_35 = arith.constant 0 : index
    %84 = tpu.strided_load %arg9[%c1, %c0_35] {strides = array<i32: 2, 1>} : memref<32x128xf32, #tpu.memory_space<vmem>>, vector<16x128xf32>
    %85 = arith.maximumf %83, %84 : vector<16x128xf32>
    %c120_i32 = arith.constant 120 : i32
    %86 = tpu.dynamic_rotate %85 by %c120_i32 dim 1 : vector<16x128xf32>, i32 -> vector<16x128xf32>
    %87 = arith.maximumf %85, %86 : vector<16x128xf32>
    %88 = tpu.iota {dimensions = array<i32: 0>} : vector<16x1xi32>
    %c8_i32 = arith.constant 8 : i32
    %c0_i32_36 = arith.constant 0 : i32
    %89 = arith.cmpi eq, %c8_i32, %c0_i32_36 : i32
    %c1_i32_37 = arith.constant 1 : i32
    %90 = arith.select %89, %c1_i32_37, %c8_i32 : i32
    %91 = vector.broadcast %90 : i32 to vector<16x1xi32>
    %92 = arith.remsi %88, %91 : vector<16x1xi32>
    %c0_i32_38 = arith.constant 0 : i32
    %93 = vector.broadcast %c0_i32_38 : i32 to vector<16x1xi32>
    %94 = arith.cmpi ne, %92, %93 : vector<16x1xi32>
    %c0_i32_39 = arith.constant 0 : i32
    %95 = vector.broadcast %c0_i32_39 : i32 to vector<16x1xi32>
    %96 = arith.cmpi slt, %92, %95 : vector<16x1xi32>
    %c0_i32_40 = arith.constant 0 : i32
    %97 = arith.cmpi slt, %90, %c0_i32_40 : i32
    %98 = vector.broadcast %97 : i1 to vector<16x1xi1>
    %99 = vector.broadcast %98 : vector<16x1xi1> to vector<16x1xi1>
    %100 = arith.xori %96, %99 : vector<16x1xi1>
    %101 = arith.andi %100, %94 : vector<16x1xi1>
    %102 = vector.broadcast %90 : i32 to vector<16x1xi32>
    %103 = arith.addi %92, %102 : vector<16x1xi32>
    %104 = arith.select %101, %103, %92 : vector<16x1xi1>, vector<16x1xi32>
    %c0_i32_41 = arith.constant 0 : i32
    %105 = vector.broadcast %c0_i32_41 : i32 to vector<16x1xi32>
    %106 = arith.cmpi eq, %104, %105 : vector<16x1xi32>
    %c1_i32_42 = arith.constant 1 : i32
    %107 = tpu.dynamic_rotate %87 by %c1_i32_42 dim 0 : vector<16x128xf32>, i32 -> vector<16x128xf32>
    %cst_43 = arith.constant 0.000000e+00 : f32
    %108 = vector.shape_cast %106 : vector<16x1xi1> to vector<16x1xi1>
    %109 = vector.broadcast %108 : vector<16x1xi1> to vector<16x128xi1>
    %110 = vector.broadcast %cst_43 : f32 to vector<16x128xf32>
    %111 = arith.select %109, %110, %107 : vector<16x128xi1>, vector<16x128xf32>
    %c7_i32 = arith.constant 7 : i32
    %112 = vector.broadcast %c7_i32 : i32 to vector<16x1xi32>
    %113 = arith.cmpi eq, %104, %112 : vector<16x1xi32>
    %c15_i32_44 = arith.constant 15 : i32
    %114 = tpu.dynamic_rotate %87 by %c15_i32_44 dim 0 : vector<16x128xf32>, i32 -> vector<16x128xf32>
    %cst_45 = arith.constant 0.000000e+00 : f32
    %115 = vector.shape_cast %113 : vector<16x1xi1> to vector<16x1xi1>
    %116 = vector.broadcast %115 : vector<16x1xi1> to vector<16x128xi1>
    %117 = vector.broadcast %cst_45 : f32 to vector<16x128xf32>
    %118 = arith.select %116, %117, %114 : vector<16x128xi1>, vector<16x128xf32>
    %119 = tpu.concatenate %111, %87, %118 in 1 : vector<16x128xf32>, vector<16x128xf32>, vector<16x128xf32> -> vector<16x384xf32>
    %120 = arith.truncf %119 : vector<16x384xf32> to vector<16x384xbf16>
    %c0_46 = arith.constant 0 : index
    %c0_47 = arith.constant 0 : index
    %121 = vector.load %arg6[%c0_46, %c0_47] : memref<384x128xbf16, #tpu.memory_space<vmem>>, vector<384x128xbf16>
    %cst_48 = arith.constant dense<0.000000e+00> : vector<16x128xf32>
    %122 = tpu.matmul %120, %121, %cst_48 {dimension_numbers = #tpu.dot_dimension_numbers<[1], [0], [0], [1], [0, 0, 1, 1], [], []>} : vector<16x384xbf16>, vector<384x128xbf16>, vector<16x128xf32> -> vector<16x128xf32>
    %c0_49 = arith.constant 0 : index
    %c0_50 = arith.constant 0 : index
    %123 = vector.load %arg7[%c0_49, %c0_50] : memref<1x128xf32, #tpu.memory_space<vmem>>, vector<1x128xf32>
    %124 = vector.broadcast %123 : vector<1x128xf32> to vector<16x128xf32>
    %125 = arith.addf %122, %124 : vector<16x128xf32>
    %cst_51 = arith.constant 0.000000e+00 : f32
    %126 = vector.broadcast %cst_51 : f32 to vector<16x128xf32>
    %127 = arith.maximumf %125, %126 : vector<16x128xf32>
    %c0_52 = arith.constant 0 : index
    %c0_53 = arith.constant 0 : index
    %128 = vector.load %arg8[%c0_52, %c0_53] : memref<16x128xf32, #tpu.memory_space<vmem>>, vector<16x128xf32>
    tpu.vector_store %arg8[%c0_52, %c0_53], %127 {strides = array<i32>} : memref<16x128xf32, #tpu.memory_space<vmem>>, vector<16x128xf32>,
    return
  }
  func.func @transform_0(%arg0: i32) -> (i32, i32) {
    %c0_i32 = arith.constant 0 : i32
    %c0_i32_0 = arith.constant 0 : i32
    return %arg0, %c0_i32 : i32, i32
  }
  func.func @transform_1(%arg0: i32) -> (i32, i32) {
    %c0_i32 = arith.constant 0 : i32
    %c0_i32_0 = arith.constant 0 : i32
    %c0_i32_1 = arith.constant 0 : i32
    return %c0_i32, %c0_i32_0 : i32, i32
  }
  func.func @transform_2(%arg0: i32) -> (i32, i32) {
    %c0_i32 = arith.constant 0 : i32
    %c0_i32_0 = arith.constant 0 : i32
    %c0_i32_1 = arith.constant 0 : i32
    return %c0_i32, %c0_i32_0 : i32, i32
  }
  func.func @transform_3(%arg0: i32) -> (i32, i32) {
    %c0_i32 = arith.constant 0 : i32
    %c0_i32_0 = arith.constant 0 : i32
    %c0_i32_1 = arith.constant 0 : i32
    return %c0_i32, %c0_i32_0 : i32, i32
  }
  func.func @transform_4(%arg0: i32) -> (i32, i32) {
    %c0_i32 = arith.constant 0 : i32
    %c0_i32_0 = arith.constant 0 : i32
    %c0_i32_1 = arith.constant 0 : i32
    return %c0_i32, %c0_i32_0 : i32, i32
  }
  func.func @transform_5(%arg0: i32) -> (i32, i32) {
    %c0_i32 = arith.constant 0 : i32
    %c0_i32_0 = arith.constant 0 : i32
    %c0_i32_1 = arith.constant 0 : i32
    return %c0_i32, %c0_i32_0 : i32, i32
  }
  func.func @transform_6(%arg0: i32) -> (i32, i32) {
    %c0_i32 = arith.constant 0 : i32
    %c0_i32_0 = arith.constant 0 : i32
    %c0_i32_1 = arith.constant 0 : i32
    return %c0_i32, %c0_i32_0 : i32, i32
  }
  func.func @transform_7(%arg0: i32) -> (i32, i32) {
    %c0_i32 = arith.constant 0 : i32
    %c0_i32_0 = arith.constant 0 : i32
    return %arg0, %c0_i32 : i32, i32
  }
}

</mosaic_0001>

<llo_original>
// kernel: _lambda_.1
$region0: #{_lambda_.1}
  #allocation0 [shape = 'u32[]', space=smem, size = 0x4, offset = 0x4, fixed_abs, tag = 'smem constant byte address 0x4 - core index']
  #allocation1 [shape = 'u32[144,128]{1,0:T(1,128)}', space=vmem, size = 0x12000, scoped, tag = 'internal scratch']
  #allocation2 [shape = 'f32[32,128]{1,0:T(8,128)}', space=vmem, size = 0x4000, scoped, tag = 'scratch operand']
  %s0 = inlined_call_operand.vmem [shape: f32[32,48], index: 0, kind: input, shape index: {}]
  %s1 = inlined_call_operand.hbm [shape: bf16[144,128], index: 1, kind: input, shape index: {}]
  %s2 = inlined_call_operand.vmem [shape: f32[1,128], index: 2, kind: input, shape index: {}]
  %s3 = inlined_call_operand.vmem [shape: bf16[384,128], index: 3, kind: input, shape index: {}]
  %s4 = inlined_call_operand.vmem [shape: f32[1,128], index: 4, kind: input, shape index: {}]
  %s5 = inlined_call_operand.vmem [shape: bf16[384,128], index: 5, kind: input, shape index: {}]
  %s6 = inlined_call_operand.vmem [shape: f32[1,128], index: 6, kind: input, shape index: {}]
  %s7 = inlined_call_operand.vmem [shape: f32[16,128], index: 7, kind: output, shape index: {}]
  %s8 = sld [smem:[#allocation0]]
  $region42: #{_lambda_.1} parent=0
    _
  %s10 = ssub.s32 1, %s8
  %s11 = scalar_select 0, %s10, %s8
  $region1: #{_lambda_.1} parent=0
    #allocation3 [shape = 'u8[36864]{0}', space=vmem, size = 0x9000, scoped, tag = 'input window, operand 1, single buffered']
    #allocation4 [shape = 's32[1]{0}', space=sflag, size = 0x4, scoped, tag = 'scoped memory for _lambda_.1']
    %12 = vsyncpa [#allocation4], 0
    // Predicated region
    $region2: #{_lambda_.1} parent=1 // pred_check
      _
    $region3: #{_lambda_.1} parent=1 // pred_check_branch
      %14 = sbr.rel (0) target = $region5
    $region4: #{_lambda_.1} parent=1 // pred_region
      _
    $region5: #{_lambda_.1} parent=1 // pred_fallthru
      _
    // Predicated region
    $region6: #{_lambda_.1} parent=1 // pred_check
      _
    $region7: #{_lambda_.1} parent=1 // pred_check_branch
      %16 = sbr.rel (0) target = $region9
    $region8: #{_lambda_.1} parent=1 // pred_region
      %s18 = ssub.s32 1152, 1152
      %19 = vsyncadd [#allocation4], %s18
      %s20 = sshll.u32 [#allocation3], 4
      %s21 = int_to_ptr.vmem [resolvable:$true] %s20
      %26 = dma.hbm_to_vmem [thread:$0]  %s1, 1152, %s21, [#allocation4], 64, 64, 4
    $region9: #{_lambda_.1} parent=1 // pred_fallthru
      _
    // Predicated region
    $region10: #{_lambda_.1} parent=1 // pred_check
      _
    $region11: #{_lambda_.1} parent=1 // pred_check_branch
      %28 = sbr.rel (0) target = $region13
    $region12: #{_lambda_.1} parent=1 // pred_region
      _
    $region13: #{_lambda_.1} parent=1 // pred_fallthru
      _
    // Predicated region
    $region14: #{_lambda_.1} parent=1 // pred_check
      _
    $region15: #{_lambda_.1} parent=1 // pred_check_branch
      %30 = sbr.rel (0) target = $region17
    $region16: #{_lambda_.1} parent=1 // pred_region
      _
    $region17: #{_lambda_.1} parent=1 // pred_fallthru
      _
    // Predicated region
    $region18: #{_lambda_.1} parent=1 // pred_check
      _
    $region19: #{_lambda_.1} parent=1 // pred_check_branch
      %32 = sbr.rel (0) target = $region21
    $region20: #{_lambda_.1} parent=1 // pred_region
      _
    $region21: #{_lambda_.1} parent=1 // pred_fallthru
      _
    // Predicated region
    $region22: #{_lambda_.1} parent=1 // pred_check
      _
    $region23: #{_lambda_.1} parent=1 // pred_check_branch
      %34 = sbr.rel (0) target = $region25
    $region24: #{_lambda_.1} parent=1 // pred_region
      _
    $region25: #{_lambda_.1} parent=1 // pred_fallthru
      _
    // Predicated region
    $region26: #{_lambda_.1} parent=1 // pred_check
      _
    $region27: #{_lambda_.1} parent=1 // pred_check_branch
      %36 = sbr.rel (0) target = $region29
    $region28: #{_lambda_.1} parent=1 // pred_region
      _
    $region29: #{_lambda_.1} parent=1 // pred_fallthru
      _
    // Predicated region
    $region30: #{_lambda_.1} parent=1 // pred_check
      _
    $region31: #{_lambda_.1} parent=1 // pred_check_branch
      %38 = sbr.rel (0) target = $region33
    $region32: #{_lambda_.1} parent=1 // pred_region
      %39 = dma.done [#allocation4], 1152
    $region33: #{_lambda_.1} parent=1 // pred_fallthru
      _
    %v41 = vld [vmem:[%s0] sm:$0xff]
    %v42 = vld [vmem:[%s0 + $0x8] sm:$0xff]
    %v43 = vld [vmem:[%s0 + $0x10] sm:$0xff]
    %v44 = vld [vmem:[%s0 + $0x18] sm:$0xff]
    %v45 = vlaneseq
    %v46 = vshrl.u32 %v45, 7
    %v47 = vadd.s32 %v46, 8
    %v48 = vadd.s32 %v46, 16
    %v49 = vadd.s32 %v46, 24
    %vm50 = vcmp.lt.s32.totalorder %v46, 0
    %v51 = vsub.s32 0, %v46
    %v52 = vsel %vm50, %v51, %v46
    %v53 = vshrl.u32 %v52, 4
    %v54 = vand.u32 %v52, 15
    %v55 = vsub.s32 0, %v54
    %v56 = vsel %vm50, %v55, %v54
    %vm57 = vcmp.lt.s32.totalorder %v47, 0
    %v58 = vsub.s32 0, %v47
    %v59 = vsel %vm57, %v58, %v47
    %v60 = vshrl.u32 %v59, 4
    %v61 = vand.u32 %v59, 15
    %v62 = vsub.s32 0, %v61
    %v63 = vsel %vm57, %v62, %v61
    %vm64 = vcmp.lt.s32.totalorder %v48, 0
    %v65 = vsub.s32 0, %v48
    %v66 = vsel %vm64, %v65, %v48
    %v67 = vshrl.u32 %v66, 4
    %v68 = vand.u32 %v66, 15
    %v69 = vsub.s32 0, %v68
    %v70 = vsel %vm64, %v69, %v68
    %vm71 = vcmp.lt.s32.totalorder %v49, 0
    %v72 = vsub.s32 0, %v49
    %v73 = vsel %vm71, %v72, %v49
    %v74 = vshrl.u32 %v73, 4
    %v75 = vand.u32 %v73, 15
    %v76 = vsub.s32 0, %v75
    %v77 = vsel %vm71, %v76, %v75
    %vm78 = vcmp.ne.s32.totalorder %v56, 0
    %vm79 = vcmp.ne.s32.totalorder %v63, 0
    %vm80 = vcmp.ne.s32.totalorder %v70, 0
    %vm81 = vcmp.ne.s32.totalorder %v77, 0
    %vm82 = vcmp.lt.s32.totalorder %v56, 0
    %vm83 = vcmp.lt.s32.totalorder %v63, 0
    %vm84 = vcmp.lt.s32.totalorder %v70, 0
    %vm85 = vcmp.lt.s32.totalorder %v77, 0
    %vm86 = vmand %vm82, %vm78
    %vm87 = vmand %vm83, %vm79
    %vm88 = vmand %vm84, %vm80
    %vm89 = vmand %vm85, %vm81
    %v90 = vadd.s32 %v56, 16
    %v91 = vadd.s32 %v63, 16
    %v92 = vadd.s32 %v70, 16
    %v93 = vadd.s32 %v77, 16
    %v94 = vsel %vm86, %v90, %v56
    %v95 = vsel %vm87, %v91, %v63
    %v96 = vsel %vm88, %v92, %v70
    %v97 = vsel %vm89, %v93, %v77
    %vm98 = vcmp.eq.s32.totalorder %v94, 0
    %vm99 = vcmp.eq.s32.totalorder %v95, 0
    %vm100 = vcmp.eq.s32.totalorder %v96, 0
    %vm101 = vcmp.eq.s32.totalorder %v97, 0
    %v102 = vrot.slane %v41, 7
    %v103 = vrot.slane %v42, 7
    %v104 = vrot.slane %v43, 7
    %v105 = vrot.slane %v44, 7
    %vm106 = vcmp.lt.s32.totalorder %v46, 1
    %v107 = vsel %vm106, %v104, %v105
    %v108 = vsel %vm106, %v103, %v104
    %v109 = vsel %vm106, %v102, %v103
    %v110 = vsel %vm106, %v105, %v102
    %v111 = vsel %vm98, 1, 0
    %v112 = vsel %vm99, 1, 0
    %v113 = vsel %vm100, 1, 0
    %v114 = vsel %vm101, 1, 0
    %vm115 = vcmp.eq.s32.totalorder %v111, 1
    %vm116 = vcmp.eq.s32.totalorder %v112, 1
    %vm117 = vcmp.eq.s32.totalorder %v113, 1
    %vm118 = vcmp.eq.s32.totalorder %v114, 1
    %v119 = vsel %vm115, 0.0, %v110
    %v120 = vsel %vm116, 0.0, %v109
    %v121 = vsel %vm117, 0.0, %v108
    %v122 = vsel %vm118, 0.0, %v107
    %vm123 = vcmp.eq.s32.totalorder %v94, 15
    %vm124 = vcmp.eq.s32.totalorder %v95, 15
    %vm125 = vcmp.eq.s32.totalorder %v96, 15
    %vm126 = vcmp.eq.s32.totalorder %v97, 15
    %v127 = vrot.slane %v41, 1
    %v128 = vrot.slane %v42, 1
    %v129 = vrot.slane %v43, 1
    %v130 = vrot.slane %v44, 1
    %vm131 = vcmp.lt.s32.totalorder %v46, 7
    %v132 = vsel %vm131, %v129, %v130
    %v133 = vsel %vm131, %v128, %v129
    %v134 = vsel %vm131, %v127, %v128
    %v135 = vsel %vm131, %v130, %v127
    %v136 = vsel %vm123, 1, 0
    %v137 = vsel %vm124, 1, 0
    %v138 = vsel %vm125, 1, 0
    %v139 = vsel %vm126, 1, 0
    %vm140 = vcmp.eq.s32.totalorder %v136, 1
    %vm141 = vcmp.eq.s32.totalorder %v137, 1
    %vm142 = vcmp.eq.s32.totalorder %v138, 1
    %vm143 = vcmp.eq.s32.totalorder %v139, 1
    %v144 = vsel %vm140, 0.0, %v134
    %v145 = vsel %vm141, 0.0, %v133
    %v146 = vsel %vm142, 0.0, %v132
    %v147 = vsel %vm143, 0.0, %v135
    %152 = vrot.lane.b32.xlu0 %v41, 48
    %v153 = vpop.permute.xlu0 %152
    %154 = vrot.lane.b32.xlu0 %v42, 48
    %v155 = vpop.permute.xlu0 %154
    %156 = vrot.lane.b32.xlu0 %v43, 48
    %v157 = vpop.permute.xlu0 %156
    %158 = vrot.lane.b32.xlu0 %v44, 48
    %v159 = vpop.permute.xlu0 %158
    %168 = vrot.lane.b32.xlu0 %v144, 96
    %v169 = vpop.permute.xlu0 %168
    %170 = vrot.lane.b32.xlu0 %v145, 96
    %v171 = vpop.permute.xlu0 %170
    %172 = vrot.lane.b32.xlu0 %v146, 96
    %v173 = vpop.permute.xlu0 %172
    %174 = vrot.lane.b32.xlu0 %v147, 96
    %v175 = vpop.permute.xlu0 %174
    %vm180 = vcmask 392192
    %v181 = vsel %vm180, %v119, %v153
    %v182 = vsel %vm180, %v120, %v155
    %v183 = vsel %vm180, %v121, %v157
    %v184 = vsel %vm180, %v122, %v159
    %vm185 = vcmask 785408
    %v186 = vsel %vm185, %v181, %v169
    %v187 = vsel %vm185, %v182, %v171
    %v188 = vsel %vm185, %v183, %v173
    %v189 = vsel %vm185, %v184, %v175
    %v190 = vpack.c.bf16 %v187, %v186
    %v191 = vpack.c.bf16 %v171, %v169
    %v192 = vpack.c.bf16 %v189, %v188
    %v193 = vpack.c.bf16 %v175, %v173
    %v194 = vld [vmem:[#allocation3] sm:$0xf]
    %v195 = vld [vmem:[#allocation3 + $0x4] sm:$0xf]
    %v196 = vld [vmem:[#allocation3 + $0x8] sm:$0xf]
    %v197 = vld [vmem:[#allocation3 + $0xc] sm:$0xf]
    %v198 = vld [vmem:[#allocation3 + $0x10] sm:$0xf]
    %v199 = vld [vmem:[#allocation3 + $0x14] sm:$0xf]
    %v200 = vld [vmem:[#allocation3 + $0x18] sm:$0xf]
    %v201 = vld [vmem:[#allocation3 + $0x1c] sm:$0xf]
    %v202 = vld [vmem:[#allocation3 + $0x20] sm:$0xf]
    %v203 = vld [vmem:[#allocation3 + $0x24] sm:$0xf]
    %v204 = vld [vmem:[#allocation3 + $0x28] sm:$0xf]
    %v205 = vld [vmem:[#allocation3 + $0x2c] sm:$0xf]
    %v206 = vld [vmem:[#allocation3 + $0x30] sm:$0xf]
    %v207 = vld [vmem:[#allocation3 + $0x34] sm:$0xf]
    %v208 = vld [vmem:[#allocation3 + $0x38] sm:$0xf]
    %v209 = vld [vmem:[#allocation3 + $0x3c] sm:$0xf]
    %v210 = vld [vmem:[#allocation3 + $0x40] sm:$0xf]
    %v211 = vld [vmem:[#allocation3 + $0x44] sm:$0xf]
    %v212 = vld [vmem:[%s2] sm:$0x1]
    %v214 = vlaneseq
    %v215 = vshrl.u32 %v214, 7
    %v216 = vsub.s32 0, %v215
    %v217 = vrot.slane %v212, %v216
    %v237 = vunpack.c.l.b16 %v194
    %v238 = vunpack.c.l.b16 %v195
    %v239 = vunpack.c.l.b16 %v196
    %v240 = vunpack.c.l.b16 %v197
    %v241 = vunpack.c.l.b16 %v198
    %v242 = vunpack.c.l.b16 %v199
    %v243 = vunpack.c.l.b16 %v200
    %v244 = vunpack.c.l.b16 %v201
    %v245 = vunpack.c.l.b16 %v202
    %v246 = vunpack.c.l.b16 %v203
    %v247 = vunpack.c.l.b16 %v204
    %v248 = vunpack.c.l.b16 %v205
    %v249 = vunpack.c.l.b16 %v206
    %v250 = vunpack.c.l.b16 %v207
    %v251 = vunpack.c.l.b16 %v208
    %v252 = vunpack.c.l.b16 %v209
    %v253 = vunpack.c.l.b16 %v210
    %v254 = vunpack.c.l.b16 %v211
    %v255 = vpack.c.b16 %v238, %v237
    %v256 = vpack.c.b16 %v240, %v239
    %v257 = vpack.c.b16 %v242, %v241
    %v258 = vpack.c.b16 %v244, %v243
    %v259 = vpack.c.b16 %v246, %v245
    %v260 = vpack.c.b16 %v248, %v247
    %v261 = vpack.c.b16 %v250, %v249
    %v262 = vpack.c.b16 %v252, %v251
    %v263 = vpack.c.b16 %v254, %v253
    %vm273 = vcmask 130048
    %v275 = vsel %vm273, %v191, 0
    %v278 = vsel %vm273, %v193, 0
    %280 = vmatprep.subr.bf16.mxu0 0
    %281 = vmatpush1.bf16.msra.mxu0 %v255
    %282 = vmatprep.subr.bf16.mxu0 0
    %283 = vmatpush1.bf16.msra.mxu0 %v256
    %284 = vmatprep.subr.bf16.mxu0 0
    %285 = vmatpush1.bf16.msra.mxu0 %v257
    %286 = vmatprep.subr.bf16.mxu0 0
    %287 = vmatpush1.bf16.msra.mxu0 %v258
    %288 = vmatprep.subr.bf16.mxu0 0
    %289 = vmatpush1.bf16.msra.mxu0 %v259
    %290 = vmatprep.subr.bf16.mxu0 0
    %291 = vmatpush1.bf16.msra.mxu0 %v260
    %292 = vmatprep.subr.bf16.mxu0 0
    %293 = vmatpush1.bf16.msra.mxu0 %v261
    %294 = vmatprep.subr.bf16.mxu0 0
    %295 = vmatpush1.bf16.msra.mxu0 %v262
    %296 = vmatprep.subr.bf16.mxu0 0
    %297 = vmatpush1.bf16.msra.mxu0 %v263
    %298 = vmatprep.subr.bf16.mxu0 0
    %299 = vmatpush1.bf16.msra.mxu0 0
    %300 = vmatprep.subr.bf16.mxu0 0
    %301 = vmatpush1.bf16.msra.mxu0 0
    %302 = vmatprep.subr.bf16.mxu0 0
    %303 = vmatpush1.bf16.msra.mxu0 0
    %304 = vmatprep.subr.bf16.mxu0 0
    %305 = vmatpush1.bf16.msra.mxu0 0
    %306 = vmatprep.subr.bf16.mxu0 0
    %307 = vmatpush1.bf16.msra.mxu0 0
    %308 = vmatprep.subr.bf16.mxu0 0
    %309 = vmatpush1.bf16.msra.mxu0 0
    %310 = vmatprep.subr.bf16.mxu0 0
    %311 = vmatpush1.bf16.msra.mxu0 0
    %312 = vmatprep.mubr.bf16.mxu0 %v275
    %313 = vmatmul.mubr.bf16.gmra.mrb[0].mxu0 %v190
    %v314 = vpop.f32.mrb[0].mxu0
    %v315 = vadd.f32 %v217, %v314
    %v316 = vpop.f32.mrb[0].mxu0
    %v317 = vpop.f32.mrb[0].mxu0
    %v318 = vadd.f32 %v217, %v317
    %v319 = vpop.f32.mrb[0].mxu0
    %320 = vmatprep.mubr.bf16.mxu0 %v278
    %321 = vmatmul.mubr.bf16.gmra.mrb[0].mxu0 %v192
    %v322 = vpop.f32.mrb[0].mxu0
    %v323 = vadd.f32 %v217, %v322
    %v324 = vpop.f32.mrb[0].mxu0
    %v325 = vpop.f32.mrb[0].mxu0
    %v326 = vadd.f32 %v217, %v325
    %v327 = vpop.f32.mrb[0].mxu0
    %328 = vdwg.mxu0
    %v329 = vmax.f32 %v315, 0.0
    %v330 = vmax.f32 %v318, 0.0
    %v331 = vmax.f32 %v323, 0.0
    %v332 = vmax.f32 %v326, 0.0
    %v333 = vrot.slane %v329, 7
    %v334 = vrot.slane %v330, 7
    %v335 = vrot.slane %v331, 7
    %v336 = vrot.slane %v332, 7
    %v337 = vsel %vm106, %v335, %v336
    %v338 = vsel %vm106, %v334, %v335
    %v339 = vsel %vm106, %v333, %v334
    %v340 = vsel %vm106, %v336, %v333
    %v341 = vsel %vm115, 0.0, %v340
    %v342 = vsel %vm116, 0.0, %v339
    %v343 = vsel %vm117, 0.0, %v338
    %v344 = vsel %vm118, 0.0, %v337
    %v345 = vrot.slane %v329, 1
    %v346 = vrot.slane %v330, 1
    %v347 = vrot.slane %v331, 1
    %v348 = vrot.slane %v332, 1
    %v349 = vsel %vm131, %v347, %v348
    %v350 = vsel %vm131, %v346, %v347
    %v351 = vsel %vm131, %v345, %v346
    %v352 = vsel %vm131, %v348, %v345
    %v353 = vsel %vm140, 0.0, %v351
    %v354 = vsel %vm141, 0.0, %v350
    %v355 = vsel %vm142, 0.0, %v349
    %v356 = vsel %vm143, 0.0, %v352
    %v357 = vpack.c.bf16 %v342, %v341
    %v358 = vpack.c.bf16 %v330, %v329
    %v359 = vpack.c.bf16 %v354, %v353
    %v360 = vpack.c.bf16 %v344, %v343
    %v361 = vpack.c.bf16 %v332, %v331
    %v362 = vpack.c.bf16 %v356, %v355
    %v363 = vld [vmem:[%s3] sm:$0xf]
    %v364 = vld [vmem:[%s3 + $0x4] sm:$0xf]
    %v365 = vld [vmem:[%s3 + $0x8] sm:$0xf]
    %v366 = vld [vmem:[%s3 + $0xc] sm:$0xf]
    %v367 = vld [vmem:[%s3 + $0x10] sm:$0xf]
    %v368 = vld [vmem:[%s3 + $0x14] sm:$0xf]
    %v369 = vld [vmem:[%s3 + $0x18] sm:$0xf]
    %v370 = vld [vmem:[%s3 + $0x1c] sm:$0xf]
    %v371 = vld [vmem:[%s3 + $0x20] sm:$0xf]
    %v372 = vld [vmem:[%s3 + $0x24] sm:$0xf]
    %v373 = vld [vmem:[%s3 + $0x28] sm:$0xf]
    %v374 = vld [vmem:[%s3 + $0x2c] sm:$0xf]
    %v375 = vld [vmem:[%s3 + $0x30] sm:$0xf]
    %v376 = vld [vmem:[%s3 + $0x34] sm:$0xf]
    %v377 = vld [vmem:[%s3 + $0x38] sm:$0xf]
    %v378 = vld [vmem:[%s3 + $0x3c] sm:$0xf]
    %v379 = vld [vmem:[%s3 + $0x40] sm:$0xf]
    %v380 = vld [vmem:[%s3 + $0x44] sm:$0xf]
    %v381 = vld [vmem:[%s3 + $0x48] sm:$0xf]
    %v382 = vld [vmem:[%s3 + $0x4c] sm:$0xf]
    %v383 = vld [vmem:[%s3 + $0x50] sm:$0xf]
    %v384 = vld [vmem:[%s3 + $0x54] sm:$0xf]
    %v385 = vld [vmem:[%s3 + $0x58] sm:$0xf]
    %v386 = vld [vmem:[%s3 + $0x5c] sm:$0xf]
    %v387 = vld [vmem:[%s3 + $0x60] sm:$0xf]
    %v388 = vld [vmem:[%s3 + $0x64] sm:$0xf]
    %v389 = vld [vmem:[%s3 + $0x68] sm:$0xf]
    %v390 = vld [vmem:[%s3 + $0x6c] sm:$0xf]
    %v391 = vld [vmem:[%s3 + $0x70] sm:$0xf]
    %v392 = vld [vmem:[%s3 + $0x74] sm:$0xf]
    %v393 = vld [vmem:[%s3 + $0x78] sm:$0xf]
    %v394 = vld [vmem:[%s3 + $0x7c] sm:$0xf]
    %v395 = vld [vmem:[%s3 + $0x80] sm:$0xf]
    %v396 = vld [vmem:[%s3 + $0x84] sm:$0xf]
    %v397 = vld [vmem:[%s3 + $0x88] sm:$0xf]
    %v398 = vld [vmem:[%s3 + $0x8c] sm:$0xf]
    %v399 = vld [vmem:[%s3 + $0x90] sm:$0xf]
    %v400 = vld [vmem:[%s3 + $0x94] sm:$0xf]
    %v401 = vld [vmem:[%s3 + $0x98] sm:$0xf]
    %v402 = vld [vmem:[%s3 + $0x9c] sm:$0xf]
    %v403 = vld [vmem:[%s3 + $0xa0] sm:$0xf]
    %v404 = vld [vmem:[%s3 + $0xa4] sm:$0xf]
    %v405 = vld [vmem:[%s3 + $0xa8] sm:$0xf]
    %v406 = vld [vmem:[%s3 + $0xac] sm:$0xf]
    %v407 = vld [vmem:[%s3 + $0xb0] sm:$0xf]
    %v408 = vld [vmem:[%s3 + $0xb4] sm:$0xf]
    %v409 = vld [vmem:[%s3 + $0xb8] sm:$0xf]
    %v410 = vld [vmem:[%s3 + $0xbc] sm:$0xf]
    %v411 = vld [vmem:[%s4] sm:$0x1]
    %v413 = vlaneseq
    %v414 = vshrl.u32 %v413, 7
    %v415 = vsub.s32 0, %v414
    %v416 = vrot.slane %v411, %v415
    %v466 = vunpack.c.l.b16 %v363
    %v467 = vunpack.c.l.b16 %v364
    %v468 = vunpack.c.l.b16 %v365
    %v469 = vunpack.c.l.b16 %v366
    %v470 = vunpack.c.l.b16 %v367
    %v471 = vunpack.c.l.b16 %v368
    %v472 = vunpack.c.l.b16 %v369
    %v473 = vunpack.c.l.b16 %v370
    %v474 = vunpack.c.l.b16 %v371
    %v475 = vunpack.c.l.b16 %v372
    %v476 = vunpack.c.l.b16 %v373
    %v477 = vunpack.c.l.b16 %v374
    %v478 = vunpack.c.l.b16 %v375
    %v479 = vunpack.c.l.b16 %v376
    %v480 = vunpack.c.l.b16 %v377
    %v481 = vunpack.c.l.b16 %v378
    %v482 = vunpack.c.l.b16 %v379
    %v483 = vunpack.c.l.b16 %v380
    %v484 = vunpack.c.l.b16 %v381
    %v485 = vunpack.c.l.b16 %v382
    %v486 = vunpack.c.l.b16 %v383
    %v487 = vunpack.c.l.b16 %v384
    %v488 = vunpack.c.l.b16 %v385
    %v489 = vunpack.c.l.b16 %v386
    %v490 = vunpack.c.l.b16 %v387
    %v491 = vunpack.c.l.b16 %v388
    %v492 = vunpack.c.l.b16 %v389
    %v493 = vunpack.c.l.b16 %v390
    %v494 = vunpack.c.l.b16 %v391
    %v495 = vunpack.c.l.b16 %v392
    %v496 = vunpack.c.l.b16 %v393
    %v497 = vunpack.c.l.b16 %v394
    %v498 = vunpack.c.l.b16 %v395
    %v499 = vunpack.c.l.b16 %v396
    %v500 = vunpack.c.l.b16 %v397
    %v501 = vunpack.c.l.b16 %v398
    %v502 = vunpack.c.l.b16 %v399
    %v503 = vunpack.c.l.b16 %v400
    %v504 = vunpack.c.l.b16 %v401
    %v505 = vunpack.c.l.b16 %v402
    %v506 = vunpack.c.l.b16 %v403
    %v507 = vunpack.c.l.b16 %v404
    %v508 = vunpack.c.l.b16 %v405
    %v509 = vunpack.c.l.b16 %v406
    %v510 = vunpack.c.l.b16 %v407
    %v511 = vunpack.c.l.b16 %v408
    %v512 = vunpack.c.l.b16 %v409
    %v513 = vunpack.c.l.b16 %v410
    %v514 = vpack.c.b16 %v467, %v466
    %v515 = vpack.c.b16 %v469, %v468
    %v516 = vpack.c.b16 %v471, %v470
    %v517 = vpack.c.b16 %v473, %v472
    %v518 = vpack.c.b16 %v475, %v474
    %v519 = vpack.c.b16 %v477, %v476
    %v520 = vpack.c.b16 %v479, %v478
    %v521 = vpack.c.b16 %v481, %v480
    %v522 = vpack.c.b16 %v483, %v482
    %v523 = vpack.c.b16 %v485, %v484
    %v524 = vpack.c.b16 %v487, %v486
    %v525 = vpack.c.b16 %v489, %v488
    %v526 = vpack.c.b16 %v491, %v490
    %v527 = vpack.c.b16 %v493, %v492
    %v528 = vpack.c.b16 %v495, %v494
    %v529 = vpack.c.b16 %v497, %v496
    %v530 = vpack.c.b16 %v499, %v498
    %v531 = vpack.c.b16 %v501, %v500
    %v532 = vpack.c.b16 %v503, %v502
    %v533 = vpack.c.b16 %v505, %v504
    %v534 = vpack.c.b16 %v507, %v506
    %v535 = vpack.c.b16 %v509, %v508
    %v536 = vpack.c.b16 %v511, %v510
    %v537 = vpack.c.b16 %v513, %v512
    %562 = vmatprep.subr.bf16.mxu0 0
    %563 = vmatpush1.bf16.msra.mxu0 %v514
    %564 = vmatprep.subr.bf16.mxu0 0
    %565 = vmatpush1.bf16.msra.mxu0 %v515
    %566 = vmatprep.subr.bf16.mxu0 0
    %567 = vmatpush1.bf16.msra.mxu0 %v516
    %568 = vmatprep.subr.bf16.mxu0 0
    %569 = vmatpush1.bf16.msra.mxu0 %v517
    %570 = vmatprep.subr.bf16.mxu0 0
    %571 = vmatpush1.bf16.msra.mxu0 %v518
    %572 = vmatprep.subr.bf16.mxu0 0
    %573 = vmatpush1.bf16.msra.mxu0 %v519
    %574 = vmatprep.subr.bf16.mxu0 0
    %575 = vmatpush1.bf16.msra.mxu0 %v520
    %576 = vmatprep.subr.bf16.mxu0 0
    %577 = vmatpush1.bf16.msra.mxu0 %v521
    %578 = vmatprep.subr.bf16.mxu0 0
    %579 = vmatpush1.bf16.msra.mxu0 %v522
    %580 = vmatprep.subr.bf16.mxu0 0
    %581 = vmatpush1.bf16.msra.mxu0 %v523
    %582 = vmatprep.subr.bf16.mxu0 0
    %583 = vmatpush1.bf16.msra.mxu0 %v524
    %584 = vmatprep.subr.bf16.mxu0 0
    %585 = vmatpush1.bf16.msra.mxu0 %v525
    %586 = vmatprep.subr.bf16.mxu0 0
    %587 = vmatpush1.bf16.msra.mxu0 %v526
    %588 = vmatprep.subr.bf16.mxu0 0
    %589 = vmatpush1.bf16.msra.mxu0 %v527
    %590 = vmatprep.subr.bf16.mxu0 0
    %591 = vmatpush1.bf16.msra.mxu0 %v528
    %592 = vmatprep.subr.bf16.mxu0 0
    %593 = vmatpush1.bf16.msra.mxu0 %v529
    %594 = vmatprep.mubr.bf16.mxu0 %v358
    %595 = vmatmul.mubr.bf16.gmra.mrb[0].mxu0 %v357
    %v596 = vpop.f32.mrb[0].mxu0
    %v597 = vadd.f32 %v416, %v596
    %v598 = vpop.f32.mrb[0].mxu0
    %v599 = vpop.f32.mrb[0].mxu0
    %v600 = vadd.f32 %v416, %v599
    %v601 = vpop.f32.mrb[0].mxu0
    %602 = vmatprep.mubr.bf16.mxu0 %v361
    %603 = vmatmul.mubr.bf16.gmra.mrb[0].mxu0 %v360
    %v604 = vpop.f32.mrb[0].mxu0
    %v605 = vadd.f32 %v416, %v604
    %v606 = vpop.f32.mrb[0].mxu0
    %v607 = vpop.f32.mrb[0].mxu0
    %v608 = vadd.f32 %v416, %v607
    %v609 = vpop.f32.mrb[0].mxu0
    %610 = vdwg.mxu0
    %611 = vmatprep.subr.bf16.mxu0 0
    %612 = vmatpush1.bf16.msra.mxu0 %v530
    %613 = vmatprep.subr.bf16.mxu0 0
    %614 = vmatpush1.bf16.msra.mxu0 %v531
    %615 = vmatprep.subr.bf16.mxu0 0
    %616 = vmatpush1.bf16.msra.mxu0 %v532
    %617 = vmatprep.subr.bf16.mxu0 0
    %618 = vmatpush1.bf16.msra.mxu0 %v533
    %619 = vmatprep.subr.bf16.mxu0 0
    %620 = vmatpush1.bf16.msra.mxu0 %v534
    %621 = vmatprep.subr.bf16.mxu0 0
    %622 = vmatpush1.bf16.msra.mxu0 %v535
    %623 = vmatprep.subr.bf16.mxu0 0
    %624 = vmatpush1.bf16.msra.mxu0 %v536
    %625 = vmatprep.subr.bf16.mxu0 0
    %626 = vmatpush1.bf16.msra.mxu0 %v537
    %627 = vmatprep.subr.bf16.mxu0 0
    %628 = vmatpush1.bf16.msra.mxu0 0
    %629 = vmatprep.subr.bf16.mxu0 0
    %630 = vmatpush1.bf16.msra.mxu0 0
    %631 = vmatprep.subr.bf16.mxu0 0
    %632 = vmatpush1.bf16.msra.mxu0 0
    %633 = vmatprep.subr.bf16.mxu0 0
    %634 = vmatpush1.bf16.msra.mxu0 0
    %635 = vmatprep.subr.bf16.mxu0 0
    %636 = vmatpush1.bf16.msra.mxu0 0
    %637 = vmatprep.subr.bf16.mxu0 0
    %638 = vmatpush1.bf16.msra.mxu0 0
    %639 = vmatprep.subr.bf16.mxu0 0
    %640 = vmatpush1.bf16.msra.mxu0 0
    %641 = vmatprep.subr.bf16.mxu0 0
    %642 = vmatpush1.bf16.msra.mxu0 0
    %643 = vmatprep.mubr.bf16.mxu0 0
    %644 = vmatmul.mubr.bf16.gmra.mrb[0].mxu0 %v359
    %v645 = vpop.f32.mrb[0].mxu0
    %v646 = vadd.f32 %v597, %v645
    %v647 = vpop.f32.mrb[0].mxu0
    %v648 = vpop.f32.mrb[0].mxu0
    %v649 = vadd.f32 %v600, %v648
    %v650 = vpop.f32.mrb[0].mxu0
    %651 = vmatprep.mubr.bf16.mxu0 0
    %652 = vmatmul.mubr.bf16.gmra.mrb[0].mxu0 %v362
    %v653 = vpop.f32.mrb[0].mxu0
    %v654 = vadd.f32 %v605, %v653
    %v655 = vpop.f32.mrb[0].mxu0
    %v656 = vpop.f32.mrb[0].mxu0
    %v657 = vadd.f32 %v608, %v656
    %v658 = vpop.f32.mrb[0].mxu0
    %659 = vdwg.mxu0
    %v660 = vadd.f32 %v646, %v329
    %v661 = vadd.f32 %v649, %v330
    %v662 = vadd.f32 %v654, %v331
    %v663 = vadd.f32 %v657, %v332
    %v664 = vmax.f32 %v660, 0.0
    %v665 = vmax.f32 %v661, 0.0
    %v666 = vmax.f32 %v662, 0.0
    %v667 = vmax.f32 %v663, 0.0
    %668 = vst [vmem:[#allocation2] sm:$0xff] %v664
    %669 = vst [vmem:[#allocation2 + $0x8] sm:$0xff] %v665
    %670 = vst [vmem:[#allocation2 + $0x10] sm:$0xff] %v666
    %671 = vst [vmem:[#allocation2 + $0x18] sm:$0xff] %v667
    %v672 = vld [vmem:[#allocation2] ss:$2 sm:$0xff]
    %s673 = scalar_lea.vmem [#allocation2], 16
    %v674 = vld [vmem:[%s673] ss:$2 sm:$0xff]
    %s675 = scalar_lea.vmem [#allocation2], 1
    %v676 = vld [vmem:[%s675] ss:$2 sm:$0xff]
    %s677 = scalar_lea.vmem [#allocation2], 17
    %v678 = vld [vmem:[%s677] ss:$2 sm:$0xff]
    %v679 = vmax.f32 %v672, %v676
    %v680 = vmax.f32 %v674, %v678
    %681 = vrot.lane.b32.xlu0 %v679, 120
    %v682 = vpop.permute.xlu0 %681
    %683 = vrot.lane.b32.xlu0 %v680, 120
    %v684 = vpop.permute.xlu0 %683
    %v685 = vmax.f32 %v679, %v682
    %v686 = vmax.f32 %v680, %v684
    %vm687 = vcmp.lt.s32.totalorder %v46, 0
    %v688 = vsub.s32 0, %v46
    %v689 = vsel %vm687, %v688, %v46
    %v690 = vshrl.u32 %v689, 3
    %v691 = vand.u32 %v689, 7
    %v692 = vsub.s32 0, %v691
    %v693 = vsel %vm687, %v692, %v691
    %vm694 = vcmp.lt.s32.totalorder %v47, 0
    %v695 = vsub.s32 0, %v47
    %v696 = vsel %vm694, %v695, %v47
    %v697 = vshrl.u32 %v696, 3
    %v698 = vand.u32 %v696, 7
    %v699 = vsub.s32 0, %v698
    %v700 = vsel %vm694, %v699, %v698
    %vm701 = vcmp.ne.s32.totalorder %v693, 0
    %vm702 = vcmp.ne.s32.totalorder %v700, 0
    %vm703 = vcmp.lt.s32.totalorder %v693, 0
    %vm704 = vcmp.lt.s32.totalorder %v700, 0
    %vm705 = vmand %vm703, %vm701
    %vm706 = vmand %vm704, %vm702
    %v707 = vadd.s32 %v693, 8
    %v708 = vadd.s32 %v700, 8
    %v709 = vsel %vm705, %v707, %v693
    %v710 = vsel %vm706, %v708, %v700
    %vm711 = vcmp.eq.s32.totalorder %v709, 0
    %vm712 = vcmp.eq.s32.totalorder %v710, 0
    %v713 = vrot.slane %v685, 7
    %v714 = vrot.slane %v686, 7
    %v715 = vsel %vm106, %v713, %v714
    %v716 = vsel %vm106, %v714, %v713
    %v717 = vsel %vm711, 1, 0
    %v718 = vsel %vm712, 1, 0
    %vm719 = vcmp.eq.s32.totalorder %v717, 1
    %vm720 = vcmp.eq.s32.totalorder %v718, 1
    %v721 = vsel %vm719, 0.0, %v716
    %v722 = vsel %vm720, 0.0, %v715
    %vm723 = vcmp.eq.s32.totalorder %v709, 7
    %vm724 = vcmp.eq.s32.totalorder %v710, 7
    %v725 = vrot.slane %v685, 1
    %v726 = vrot.slane %v686, 1
    %v727 = vsel %vm131, %v725, %v726
    %v728 = vsel %vm131, %v726, %v725
    %v729 = vsel %vm723, 1, 0
    %v730 = vsel %vm724, 1, 0
    %vm731 = vcmp.eq.s32.totalorder %v729, 1
    %vm732 = vcmp.eq.s32.totalorder %v730, 1
    %v733 = vsel %vm731, 0.0, %v727
    %v734 = vsel %vm732, 0.0, %v728
    %v735 = vpack.c.bf16 %v722, %v721
    %v736 = vpack.c.bf16 %v686, %v685
    %v737 = vpack.c.bf16 %v734, %v733
    %v738 = vld [vmem:[%s5] sm:$0xf]
    %v739 = vld [vmem:[%s5 + $0x4] sm:$0xf]
    %v740 = vld [vmem:[%s5 + $0x8] sm:$0xf]
    %v741 = vld [vmem:[%s5 + $0xc] sm:$0xf]
    %v742 = vld [vmem:[%s5 + $0x10] sm:$0xf]
    %v743 = vld [vmem:[%s5 + $0x14] sm:$0xf]
    %v744 = vld [vmem:[%s5 + $0x18] sm:$0xf]
    %v745 = vld [vmem:[%s5 + $0x1c] sm:$0xf]
    %v746 = vld [vmem:[%s5 + $0x20] sm:$0xf]
    %v747 = vld [vmem:[%s5 + $0x24] sm:$0xf]
    %v748 = vld [vmem:[%s5 + $0x28] sm:$0xf]
    %v749 = vld [vmem:[%s5 + $0x2c] sm:$0xf]
    %v750 = vld [vmem:[%s5 + $0x30] sm:$0xf]
    %v751 = vld [vmem:[%s5 + $0x34] sm:$0xf]
    %v752 = vld [vmem:[%s5 + $0x38] sm:$0xf]
    %v753 = vld [vmem:[%s5 + $0x3c] sm:$0xf]
    %v754 = vld [vmem:[%s5 + $0x40] sm:$0xf]
    %v755 = vld [vmem:[%s5 + $0x44] sm:$0xf]
    %v756 = vld [vmem:[%s5 + $0x48] sm:$0xf]
    %v757 = vld [vmem:[%s5 + $0x4c] sm:$0xf]
    %v758 = vld [vmem:[%s5 + $0x50] sm:$0xf]
    %v759 = vld [vmem:[%s5 + $0x54] sm:$0xf]
    %v760 = vld [vmem:[%s5 + $0x58] sm:$0xf]
    %v761 = vld [vmem:[%s5 + $0x5c] sm:$0xf]
    %v762 = vld [vmem:[%s5 + $0x60] sm:$0xf]
    %v763 = vld [vmem:[%s5 + $0x64] sm:$0xf]
    %v764 = vld [vmem:[%s5 + $0x68] sm:$0xf]
    %v765 = vld [vmem:[%s5 + $0x6c] sm:$0xf]
    %v766 = vld [vmem:[%s5 + $0x70] sm:$0xf]
    %v767 = vld [vmem:[%s5 + $0x74] sm:$0xf]
    %v768 = vld [vmem:[%s5 + $0x78] sm:$0xf]
    %v769 = vld [vmem:[%s5 + $0x7c] sm:$0xf]
    %v770 = vld [vmem:[%s5 + $0x80] sm:$0xf]
    %v771 = vld [vmem:[%s5 + $0x84] sm:$0xf]
    %v772 = vld [vmem:[%s5 + $0x88] sm:$0xf]
    %v773 = vld [vmem:[%s5 + $0x8c] sm:$0xf]
    %v774 = vld [vmem:[%s5 + $0x90] sm:$0xf]
    %v775 = vld [vmem:[%s5 + $0x94] sm:$0xf]
    %v776 = vld [vmem:[%s5 + $0x98] sm:$0xf]
    %v777 = vld [vmem:[%s5 + $0x9c] sm:$0xf]
    %v778 = vld [vmem:[%s5 + $0xa0] sm:$0xf]
    %v779 = vld [vmem:[%s5 + $0xa4] sm:$0xf]
    %v780 = vld [vmem:[%s5 + $0xa8] sm:$0xf]
    %v781 = vld [vmem:[%s5 + $0xac] sm:$0xf]
    %v782 = vld [vmem:[%s5 + $0xb0] sm:$0xf]
    %v783 = vld [vmem:[%s5 + $0xb4] sm:$0xf]
    %v784 = vld [vmem:[%s5 + $0xb8] sm:$0xf]
    %v785 = vld [vmem:[%s5 + $0xbc] sm:$0xf]
    %v786 = vld [vmem:[%s6] sm:$0x1]
    %v788 = vlaneseq
    %v789 = vshrl.u32 %v788, 7
    %v790 = vsub.s32 0, %v789
    %v791 = vrot.slane %v786, %v790
    %v841 = vunpack.c.l.b16 %v738
    %v842 = vunpack.c.l.b16 %v739
    %v843 = vunpack.c.l.b16 %v740
    %v844 = vunpack.c.l.b16 %v741
    %v845 = vunpack.c.l.b16 %v742
    %v846 = vunpack.c.l.b16 %v743
    %v847 = vunpack.c.l.b16 %v744
    %v848 = vunpack.c.l.b16 %v745
    %v849 = vunpack.c.l.b16 %v746
    %v850 = vunpack.c.l.b16 %v747
    %v851 = vunpack.c.l.b16 %v748
    %v852 = vunpack.c.l.b16 %v749
    %v853 = vunpack.c.l.b16 %v750
    %v854 = vunpack.c.l.b16 %v751
    %v855 = vunpack.c.l.b16 %v752
    %v856 = vunpack.c.l.b16 %v753
    %v857 = vunpack.c.l.b16 %v754
    %v858 = vunpack.c.l.b16 %v755
    %v859 = vunpack.c.l.b16 %v756
    %v860 = vunpack.c.l.b16 %v757
    %v861 = vunpack.c.l.b16 %v758
    %v862 = vunpack.c.l.b16 %v759
    %v863 = vunpack.c.l.b16 %v760
    %v864 = vunpack.c.l.b16 %v761
    %v865 = vunpack.c.l.b16 %v762
    %v866 = vunpack.c.l.b16 %v763
    %v867 = vunpack.c.l.b16 %v764
    %v868 = vunpack.c.l.b16 %v765
    %v869 = vunpack.c.l.b16 %v766
    %v870 = vunpack.c.l.b16 %v767
    %v871 = vunpack.c.l.b16 %v768
    %v872 = vunpack.c.l.b16 %v769
    %v873 = vunpack.c.l.b16 %v770
    %v874 = vunpack.c.l.b16 %v771
    %v875 = vunpack.c.l.b16 %v772
    %v876 = vunpack.c.l.b16 %v773
    %v877 = vunpack.c.l.b16 %v774
    %v878 = vunpack.c.l.b16 %v775
    %v879 = vunpack.c.l.b16 %v776
    %v880 = vunpack.c.l.b16 %v777
    %v881 = vunpack.c.l.b16 %v778
    %v882 = vunpack.c.l.b16 %v779
    %v883 = vunpack.c.l.b16 %v780
    %v884 = vunpack.c.l.b16 %v781
    %v885 = vunpack.c.l.b16 %v782
    %v886 = vunpack.c.l.b16 %v783
    %v887 = vunpack.c.l.b16 %v784
    %v888 = vunpack.c.l.b16 %v785
    %v889 = vpack.c.b16 %v842, %v841
    %v890 = vpack.c.b16 %v844, %v843
    %v891 = vpack.c.b16 %v846, %v845
    %v892 = vpack.c.b16 %v848, %v847
    %v893 = vpack.c.b16 %v850, %v849
    %v894 = vpack.c.b16 %v852, %v851
    %v895 = vpack.c.b16 %v854, %v853
    %v896 = vpack.c.b16 %v856, %v855
    %v897 = vpack.c.b16 %v858, %v857
    %v898 = vpack.c.b16 %v860, %v859
    %v899 = vpack.c.b16 %v862, %v861
    %v900 = vpack.c.b16 %v864, %v863
    %v901 = vpack.c.b16 %v866, %v865
    %v902 = vpack.c.b16 %v868, %v867
    %v903 = vpack.c.b16 %v870, %v869
    %v904 = vpack.c.b16 %v872, %v871
    %v905 = vpack.c.b16 %v874, %v873
    %v906 = vpack.c.b16 %v876, %v875
    %v907 = vpack.c.b16 %v878, %v877
    %v908 = vpack.c.b16 %v880, %v879
    %v909 = vpack.c.b16 %v882, %v881
    %v910 = vpack.c.b16 %v884, %v883
    %v911 = vpack.c.b16 %v886, %v885
    %v912 = vpack.c.b16 %v888, %v887
    %937 = vmatprep.subr.bf16.mxu0 0
    %938 = vmatpush1.bf16.msra.mxu0 %v889
    %939 = vmatprep.subr.bf16.mxu0 0
    %940 = vmatpush1.bf16.msra.mxu0 %v890
    %941 = vmatprep.subr.bf16.mxu0 0
    %942 = vmatpush1.bf16.msra.mxu0 %v891
    %943 = vmatprep.subr.bf16.mxu0 0
    %944 = vmatpush1.bf16.msra.mxu0 %v892
    %945 = vmatprep.subr.bf16.mxu0 0
    %946 = vmatpush1.bf16.msra.mxu0 %v893
    %947 = vmatprep.subr.bf16.mxu0 0
    %948 = vmatpush1.bf16.msra.mxu0 %v894
    %949 = vmatprep.subr.bf16.mxu0 0
    %950 = vmatpush1.bf16.msra.mxu0 %v895
    %951 = vmatprep.subr.bf16.mxu0 0
    %952 = vmatpush1.bf16.msra.mxu0 %v896
    %953 = vmatprep.subr.bf16.mxu0 0
    %954 = vmatpush1.bf16.msra.mxu0 %v897
    %955 = vmatprep.subr.bf16.mxu0 0
    %956 = vmatpush1.bf16.msra.mxu0 %v898
    %957 = vmatprep.subr.bf16.mxu0 0
    %958 = vmatpush1.bf16.msra.mxu0 %v899
    %959 = vmatprep.subr.bf16.mxu0 0
    %960 = vmatpush1.bf16.msra.mxu0 %v900
    %961 = vmatprep.subr.bf16.mxu0 0
    %962 = vmatpush1.bf16.msra.mxu0 %v901
    %963 = vmatprep.subr.bf16.mxu0 0
    %964 = vmatpush1.bf16.msra.mxu0 %v902
    %965 = vmatprep.subr.bf16.mxu0 0
    %966 = vmatpush1.bf16.msra.mxu0 %v903
    %967 = vmatprep.subr.bf16.mxu0 0
    %968 = vmatpush1.bf16.msra.mxu0 %v904
    %969 = vmatprep.mubr.bf16.mxu0 %v736
    %970 = vmatmul.mubr.bf16.gmra.mrb[0].mxu0 %v735
    %v971 = vpop.f32.mrb[0].mxu0
    %v972 = vadd.f32 %v791, %v971
    %v973 = vpop.f32.mrb[0].mxu0
    %v974 = vpop.f32.mrb[0].mxu0
    %v975 = vadd.f32 %v791, %v974
    %v976 = vpop.f32.mrb[0].mxu0
    %977 = vdwg.mxu0
    %978 = vmatprep.subr.bf16.mxu0 0
    %979 = vmatpush1.bf16.msra.mxu0 %v905
    %980 = vmatprep.subr.bf16.mxu0 0
    %981 = vmatpush1.bf16.msra.mxu0 %v906
    %982 = vmatprep.subr.bf16.mxu0 0
    %983 = vmatpush1.bf16.msra.mxu0 %v907
    %984 = vmatprep.subr.bf16.mxu0 0
    %985 = vmatpush1.bf16.msra.mxu0 %v908
    %986 = vmatprep.subr.bf16.mxu0 0
    %987 = vmatpush1.bf16.msra.mxu0 %v909
    %988 = vmatprep.subr.bf16.mxu0 0
    %989 = vmatpush1.bf16.msra.mxu0 %v910
    %990 = vmatprep.subr.bf16.mxu0 0
    %991 = vmatpush1.bf16.msra.mxu0 %v911
    %992 = vmatprep.subr.bf16.mxu0 0
    %993 = vmatpush1.bf16.msra.mxu0 %v912
    %994 = vmatprep.subr.bf16.mxu0 0
    %995 = vmatpush1.bf16.msra.mxu0 0
    %996 = vmatprep.subr.bf16.mxu0 0
    %997 = vmatpush1.bf16.msra.mxu0 0
    %998 = vmatprep.subr.bf16.mxu0 0
    %999 = vmatpush1.bf16.msra.mxu0 0
    %1000 = vmatprep.subr.bf16.mxu0 0
    %1001 = vmatpush1.bf16.msra.mxu0 0
    %1002 = vmatprep.subr.bf16.mxu0 0
    %1003 = vmatpush1.bf16.msra.mxu0 0
    %1004 = vmatprep.subr.bf16.mxu0 0
    %1005 = vmatpush1.bf16.msra.mxu0 0
    %1006 = vmatprep.subr.bf16.mxu0 0
    %1007 = vmatpush1.bf16.msra.mxu0 0
    %1008 = vmatprep.subr.bf16.mxu0 0
    %1009 = vmatpush1.bf16.msra.mxu0 0
    %1010 = vmatprep.mubr.bf16.mxu0 0
    %1011 = vmatmul.mubr.bf16.gmra.mrb[0].mxu0 %v737
    %v1012 = vpop.f32.mrb[0].mxu0
    %v1013 = vadd.f32 %v972, %v1012
    %v1014 = vpop.f32.mrb[0].mxu0
    %v1015 = vpop.f32.mrb[0].mxu0
    %v1016 = vadd.f32 %v975, %v1015
    %v1017 = vpop.f32.mrb[0].mxu0
    %1018 = vdwg.mxu0
    %v1019 = vmax.f32 %v1013, 0.0
    %v1020 = vmax.f32 %v1016, 0.0
    %1021 = vst [vmem:[%s7] sm:$0xff] %v1019
    %1022 = vst [vmem:[%s7 + $0x8] sm:$0xff] %v1020
    // Predicated region
    $region34: #{_lambda_.1} parent=1 // pred_check
      _
    $region35: #{_lambda_.1} parent=1 // pred_check_branch
      %1024 = sbr.rel (0) target = $region37
    $region36: #{_lambda_.1} parent=1 // pred_region
      _
    $region37: #{_lambda_.1} parent=1 // pred_fallthru
      _
    // Predicated region
    $region38: #{_lambda_.1} parent=1 // pred_check
      _
    $region39: #{_lambda_.1} parent=1 // pred_check_branch
      %1026 = sbr.rel (0) target = $region41
    $region40: #{_lambda_.1} parent=1 // pred_region
      _
    $region41: #{_lambda_.1} parent=1 // pred_fallthru
      _
    %1027 = vsyncpa [#allocation4], 1

</llo_original>
